<compile_context>
chip_gen: v5e
topology: v5e:2x2
jax: 0.10.0
libtpu: 0.0.40
codegen_flags: <defaults>
</compile_context>

<pallas_src>
import functools

import jax
import jax.numpy as jnp
from jax.experimental import pallas as pl
from jax.experimental.pallas import tpu as pltpu


def _round_up(x, m):
    return (x + m - 1) // m * m


def _softq_kernel(x_ref, w_ref, b_ref, o_ref, *, use_tanh, gamma):
    # Hot path: linear (_forward) + tanh squashing / (1 - gamma) scaling.
    z = jnp.dot(x_ref[...], w_ref[...], preferred_element_type=jnp.float32)
    z = z + b_ref[...]                      # (1, A) bias broadcasts over the batch tile
    if use_tanh:
        z = jnp.tanh(z) * (1.0 / (1.0 - gamma))
    o_ref[...] = z.astype(o_ref.dtype)


def softq_forward(x, w, b, *, use_tanh=True, gamma=0.99, block_rows=None,
                  compute_dtype=jnp.bfloat16, out_dtype=jnp.float32):
    """Pallas forward for SoftQNetwork.

    x : (B, obs_dim)
    w : (obs_dim, action_dim)
    b : (action_dim,)
    compute_dtype : dtype of the x / w MXU operands (accumulation is always f32).
                    Default bfloat16 halves HBM read traffic; pass None to use
                    the input dtype exactly.
    """
    B, K = x.shape
    K_w, A = w.shape
    assert K == K_w, "x / w contraction dims mismatch"
    assert b.shape == (A,), "bias shape mismatch"

    in_dtype = jnp.dtype(compute_dtype) if compute_dtype is not None else x.dtype
    elt_bytes = in_dtype.itemsize
    out_bytes = jnp.dtype(out_dtype).itemsize

    # ---- VMEM accounting uses VMEM-padded dims (Mosaic pads tiles to vreg
    # ---- multiples inside VMEM; the HBM arrays stay unpadded).
    K_v = _round_up(K, 128)
    A_v = _round_up(A, 128)
    w_resident = 2 * K_v * A_v * elt_bytes + 2 * 8 * A_v * 4      # dbl-buf w + b
    per_row = 2 * (K_v * elt_bytes + A_v * out_bytes)              # dbl-buf x + out

    if block_rows is None:
        budget = 40 * 1024 * 1024          # resident target; headroom on v7x's 64 MiB
        tile_budget = max(1 << 20, budget - w_resident)
        block_rows = int(min(2048, max(8, tile_budget // per_row)))

    if B <= 8:
        TM = B                              # full-dim block (divisibility-exempt)
    else:
        # >=2 grid steps when the batch permits (pipelining + both v7x cores).
        half = max(8, (pl.cdiv(B, 2) // 8) * 8)
        TM = max(8, (min(block_rows, half) // 8) * 8)

    grid = (pl.cdiv(B, TM),)

    # Explicit scoped-VMEM limit: above v5e's 16 MiB default, below v7x physical.
    TM_v = _round_up(TM, 8)
    needed = (2 * TM_v * K_v * elt_bytes        # x double-buffer
              + 2 * TM_v * A_v * out_bytes      # out double-buffer
              + w_resident)                     # w + b
    vmem_limit = int(min(48 << 20, max(32 << 20, 2 * needed)))

    # Cast operands (no-op if already in compute_dtype); bias kept f32.
    xc = x if x.dtype == in_dtype else x.astype(in_dtype)
    wc = w if w.dtype == in_dtype else w.astype(in_dtype)
    bp = b.reshape(1, A).astype(jnp.float32)

    cost = pl.CostEstimate(
        flops=2 * B * K * A,
        transcendentals=B * A if use_tanh else 0,
        bytes_accessed=B * K * elt_bytes + K * A * elt_bytes + A * 4 + B * A * out_bytes,
    )

    kernel = functools.partial(_softq_kernel, use_tanh=use_tanh, gamma=float(gamma))

    out = pl.pallas_call(
        kernel,
        out_shape=jax.ShapeDtypeStruct((B, A), out_dtype),
        grid_spec=pltpu.PrefetchScalarGridSpec(
            num_scalar_prefetch=0,
            grid=grid,
            in_specs=[
                # x: tiled along batch; last dim = full K (exempt from 128-divisibility).
                pl.BlockSpec((TM, K), lambda i: (i, 0)),
                # w, b: constant index_map -> fetched once, VMEM-resident across tiles.
                pl.BlockSpec((K, A), lambda i: (0, 0)),
                pl.BlockSpec((1, A), lambda i: (0, 0)),
            ],
            out_specs=pl.BlockSpec((TM, A), lambda i: (i, 0)),
        ),
        compiler_params=pltpu.CompilerParams(
            # Batch tiles are independent -> shard across TensorCores on v7x.
            dimension_semantics=("parallel",),
            vmem_limit_bytes=vmem_limit,
        ),
        cost_estimate=cost,
    )(xc, wc, bp)
    return out


def softq_forward_ref(x, w, b, *, use_tanh=True, gamma=0.99):
    out = x @ w + b
    if use_tanh:
        out = jnp.tanh(out) * (1.0 / (1.0 - gamma))
    return out


if __name__ == "__main__":
    key = jax.random.PRNGKey(0)
    kx, kw, kb = jax.random.split(key, 3)

    batch, obs_dim, action_dim = 8, 32, 16
    gamma = 0.99

    x = jax.random.normal(kx, (batch, obs_dim), dtype=jnp.float32)
    # Deterministic parameter init (synthetic; no checkpoint load).
    w = jax.random.normal(kw, (obs_dim, action_dim), dtype=jnp.float32) * 0.1
    b = jax.random.normal(kb, (action_dim,), dtype=jnp.float32) * 0.1

    ref = softq_forward_ref(x, w, b, use_tanh=True, gamma=gamma)

    # Exact path (f32 operands): tight check against the reference.
    out_f32 = jax.block_until_ready(
        softq_forward(x, w, b, use_tanh=True, gamma=gamma, compute_dtype=None))
    assert out_f32.shape == (batch, action_dim)
    assert jnp.allclose(out_f32, ref, atol=1e-4, rtol=1e-4), "f32 path mismatch vs. reference"

    # Default path (bf16 operands, f32 accumulation): input-rounding error only,
    # so the tolerance is loosened (outputs are scaled by 1/(1-gamma)=100).
    out_bf16 = jax.block_until_ready(
        softq_forward(x, w, b, use_tanh=True, gamma=gamma))
    assert out_bf16.shape == (batch, action_dim)
    assert jnp.allclose(out_bf16, ref, atol=2.0, rtol=5e-2), "bf16 path mismatch vs. reference"

    print("KERNEL_OK")
</pallas_src>

<mosaic_0001>
module attributes {stable_mosaic.version = 11 : i64} {
  func.func @_softq_kernel(%arg0: i32, %arg1: memref<8x32xf32, #tpu.memory_space<vmem>>, %arg2: memref<32x16xf32, #tpu.memory_space<vmem>>, %arg3: memref<1x16xf32, #tpu.memory_space<vmem>>, %arg4: memref<8x16xf32, #tpu.memory_space<vmem>>) attributes {dimension_semantics = [#tpu.dimension_semantics<parallel>], iteration_bounds = array<i64: 1>, scalar_prefetch = 0 : i64, scratch_operands = 0 : i64, tpu.core_type = #tpu.core_type<tc>, window_params = [{transform_indices = @transform_0, window_bounds = array<i64: 8, 32>}, {pipeline_mode = #tpu.pipeline_mode<synchronous>, transform_indices = @transform_1, window_bounds = array<i64: 32, 16>}, {pipeline_mode = #tpu.pipeline_mode<synchronous>, transform_indices = @transform_2, window_bounds = array<i64: 1, 16>}, {transform_indices = @transform_3, window_bounds = array<i64: 8, 16>}]} {
    %c0 = arith.constant 0 : index
    %c0_0 = arith.constant 0 : index
    %0 = vector.load %arg1[%c0, %c0_0] : memref<8x32xf32, #tpu.memory_space<vmem>>, vector<8x32xf32>
    %c0_1 = arith.constant 0 : index
    %c0_2 = arith.constant 0 : index
    %1 = vector.load %arg2[%c0_1, %c0_2] : memref<32x16xf32, #tpu.memory_space<vmem>>, vector<32x16xf32>
    %cst = arith.constant dense<0.000000e+00> : vector<8x16xf32>
    %2 = tpu.matmul %0, %1, %cst {dimension_numbers = #tpu.dot_dimension_numbers<[1], [0], [0], [1], [0, 0, 1, 1], [], []>} : vector<8x32xf32>, vector<32x16xf32>, vector<8x16xf32> -> vector<8x16xf32>
    %c0_3 = arith.constant 0 : index
    %c0_4 = arith.constant 0 : index
    %3 = vector.load %arg3[%c0_3, %c0_4] : memref<1x16xf32, #tpu.memory_space<vmem>>, vector<1x16xf32>
    %4 = vector.broadcast %3 : vector<1x16xf32> to vector<8x16xf32>
    %5 = arith.addf %2, %4 : vector<8x16xf32>
    %6 = math.tanh %5 : vector<8x16xf32>
    %cst_5 = arith.constant 1.000000e+02 : f32
    %7 = vector.broadcast %cst_5 : f32 to vector<8x16xf32>
    %8 = arith.mulf %6, %7 : vector<8x16xf32>
    %c0_6 = arith.constant 0 : index
    %c0_7 = arith.constant 0 : index
    %9 = vector.load %arg4[%c0_6, %c0_7] : memref<8x16xf32, #tpu.memory_space<vmem>>, vector<8x16xf32>
    tpu.vector_store %arg4[%c0_6, %c0_7], %8 {strides = array<i32>} : memref<8x16xf32, #tpu.memory_space<vmem>>, vector<8x16xf32>,
    return
  }
  func.func @transform_0(%arg0: i32) -> (i32, i32) {
    %c0_i32 = arith.constant 0 : i32
    %c0_i32_0 = arith.constant 0 : i32
    return %arg0, %c0_i32 : i32, i32
  }
  func.func @transform_1(%arg0: i32) -> (i32, i32) {
    %c0_i32 = arith.constant 0 : i32
    %c0_i32_0 = arith.constant 0 : i32
    %c0_i32_1 = arith.constant 0 : i32
    return %c0_i32, %c0_i32_0 : i32, i32
  }
  func.func @transform_2(%arg0: i32) -> (i32, i32) {
    %c0_i32 = arith.constant 0 : i32
    %c0_i32_0 = arith.constant 0 : i32
    %c0_i32_1 = arith.constant 0 : i32
    return %c0_i32, %c0_i32_0 : i32, i32
  }
  func.func @transform_3(%arg0: i32) -> (i32, i32) {
    %c0_i32 = arith.constant 0 : i32
    %c0_i32_0 = arith.constant 0 : i32
    return %arg0, %c0_i32 : i32, i32
  }
}

</mosaic_0001>

<llo_original>
// kernel: tpu_custom_call.1
$region0: #{tpu_custom_call.1}
  #allocation0 [shape = 'u32[]', space=smem, size = 0x4, offset = 0x4, fixed_abs, tag = 'smem constant byte address 0x4 - core index']
  #allocation1 [shape = 'u32[72,128]{1,0:T(1,128)}', space=vmem, size = 0x9000, scoped, tag = 'internal scratch']
  %s0 = inlined_call_operand.vmem [shape: f32[8,32], index: 0, kind: input, shape index: {}]
  %s1 = inlined_call_operand.vmem [shape: f32[32,16], index: 1, kind: input, shape index: {}]
  %s2 = inlined_call_operand.vmem [shape: f32[1,16], index: 2, kind: input, shape index: {}]
  %s3 = inlined_call_operand.hbm [shape: f32[8,16], index: 3, kind: output, shape index: {}]
  %s4 = sld [smem:[#allocation0]]
  $region22: #{tpu_custom_call.1} parent=0
    _
  %s6 = ssub.s32 1, %s4
  %s7 = scalar_select 0, %s6, %s4
  $region1: #{tpu_custom_call.1} parent=0
    #allocation2 [shape = 'u8[4096]{0}', space=vmem, size = 0x1000, scoped, tag = 'output window, operand 0, single buffered']
    #allocation3 [shape = 's32[1]{0}', space=sflag, size = 0x4, scoped, tag = 'scoped memory for tpu_custom_call.1']
    %8 = vsyncpa [#allocation3], 0
    // Predicated region
    $region2: #{tpu_custom_call.1} parent=1 // pred_check
      _
    $region3: #{tpu_custom_call.1} parent=1 // pred_check_branch
      %10 = sbr.rel (0) target = $region5
    $region4: #{tpu_custom_call.1} parent=1 // pred_region
      _
    $region5: #{tpu_custom_call.1} parent=1 // pred_fallthru
      _
    // Predicated region
    $region6: #{tpu_custom_call.1} parent=1 // pred_check
      _
    $region7: #{tpu_custom_call.1} parent=1 // pred_check_branch
      %12 = sbr.rel (0) target = $region9
    $region8: #{tpu_custom_call.1} parent=1 // pred_region
      _
    $region9: #{tpu_custom_call.1} parent=1 // pred_fallthru
      _
    // Predicated region
    $region10: #{tpu_custom_call.1} parent=1 // pred_check
      _
    $region11: #{tpu_custom_call.1} parent=1 // pred_check_branch
      %14 = sbr.rel (0) target = $region13
    $region12: #{tpu_custom_call.1} parent=1 // pred_region
      _
    $region13: #{tpu_custom_call.1} parent=1 // pred_fallthru
      _
    %v15 = vld [vmem:[%s0] sm:$0xff]
    %v16 = vld [vmem:[%s1] sm:$0xff]
    %v17 = vld [vmem:[%s1 + $0x8] sm:$0xff]
    %v18 = vld [vmem:[%s1 + $0x10] sm:$0xff]
    %v19 = vld [vmem:[%s1 + $0x18] sm:$0xff]
    %v20 = vld [vmem:[%s2] sm:$0x1]
    %v22 = vperm.slane %v20, 0
    %vm24 = vcmask 261120
    %v26 = vsel %vm24, %v15, 0
    %28 = vmatpush.msra.mxu0 0.0
    %29 = vmatpush.msra.mxu0 0.0
    %30 = vmatpush.msra.mxu0 0.0
    %31 = vmatpush.msra.mxu0 0.0
    %32 = vmatpush.msra.mxu0 0.0
    %33 = vmatpush.msra.mxu0 0.0
    %34 = vmatpush.msra.mxu0 0.0
    %35 = vmatpush.msra.mxu0 0.0
    %36 = vmatpush.msra.mxu0 0.0
    %37 = vmatpush.msra.mxu0 0.0
    %38 = vmatpush.msra.mxu0 0.0
    %39 = vmatpush.msra.mxu0 0.0
    %40 = vmatpush.msra.mxu0 %v19
    %41 = vmatpush.msra.mxu0 %v18
    %42 = vmatpush.msra.mxu0 %v17
    %43 = vmatpush.msra.mxu0 %v16
    %44 = vmatmul.f32.gmra.mxu0 %v26
    %v45 = vpop.f32.mrf.mxu0
    %v46 = vadd.f32 %v22, %v45
    %47 = vdwg.mxu0
    %v48 = vtanh.pop %v46
    %v49 = vmul.f32 %v48, 100.0
    %vm50 = vcmask 130048
    %51 = vst.msk [vmem:[#allocation2] sm:$0xff] %vm50, %v49
    // Predicated region
    $region14: #{tpu_custom_call.1} parent=1 // pred_check
      _
    $region15: #{tpu_custom_call.1} parent=1 // pred_check_branch
      %53 = sbr.rel (0) target = $region17
    $region16: #{tpu_custom_call.1} parent=1 // pred_region
      %55 = vsyncadd [#allocation3], 0
      %s57 = sshll.u32 [#allocation2], 4
      %s58 = int_to_ptr.vmem [resolvable:$true] %s57
      %s59 = sshll.u32 %s3, 4
      %s60 = int_to_ptr.hbm [resolvable:$true] %s59
      %62 = dma.vmem_to_hbm [thread:$0]  %s58, 128, %s60, [#allocation3]
    $region17: #{tpu_custom_call.1} parent=1 // pred_fallthru
      _
    // Predicated region
    $region18: #{tpu_custom_call.1} parent=1 // pred_check
      _
    $region19: #{tpu_custom_call.1} parent=1 // pred_check_branch
      %64 = sbr.rel (0) target = $region21
    $region20: #{tpu_custom_call.1} parent=1 // pred_region
      %66 = dma.done [#allocation3], 128
    $region21: #{tpu_custom_call.1} parent=1 // pred_fallthru
      _
    %67 = vsyncpa [#allocation3], 1

</llo_original>
